<compile_context>
chip_gen: v7x
topology: tpu7x:2x2x1
jax: 0.10.0
libtpu: 0.0.40
codegen_flags: <defaults>
</compile_context>

<pallas_src>
import jax
import jax.numpy as jnp
import numpy as np
from jax.experimental import pallas as pl
from jax.experimental.pallas import tpu as pltpu


# ---------------------------------------------------------------------------
# Kernel
# ---------------------------------------------------------------------------
def dan_kernel(ids1_ref, ids2_ref, emb_ref, w1_ref, b1_ref,
               w2_ref, b2_ref, wf_ref, bf_ref, out_ref):
    """Fused DAN forward for one batch tile.

    ids1_ref : (TB, S)   int32   sentence1 token ids
    ids2_ref : (TB, S)   int32   sentence2 token ids
    emb_ref  : (VP, D)   bf16    embedding table, rows >= V zero, 1/S pre-folded
    w1_ref   : (2D, 128) bf16    tower-fused layer1 (w1 | w2), zero-padded
    b1_ref   : (1, 128)  f32
    w2_ref   : (128,128) bf16    tower-fused layer2 (w12 | w21), zero-padded
    b2_ref   : (1, 128)  f32
    wf_ref   : (128,128) bf16    final Linear, zero-padded lane-dense
    bf_ref   : (1, 128)  f32
    out_ref  : (TB, 128) f32     caller slices [:, :output_size]
    """
    TB, S = ids1_ref.shape
    VP = emb_ref.shape[0]
    B2 = 2 * TB

    # --- token counts: sentence1 rows stacked over sentence2 rows ----------
    ids = jnp.concatenate([ids1_ref[...], ids2_ref[...]], axis=0)        # (2TB, S)
    vocab_iota = jax.lax.broadcasted_iota(jnp.int32, (B2, VP), 1)        # (2TB, VP)

    counts = jnp.zeros((B2, VP), jnp.float32)
    for s in range(S):  # S is a trace-time constant -> fully unrolled, tiny
        counts = counts + (ids[:, s:s + 1] == vocab_iota).astype(jnp.float32)

    # --- mean pool as one MXU matmul (1/S folded into emb; counts<=S exact
    #     in bf16) ------------------------------------------------------------
    pooled = jnp.dot(counts.astype(jnp.bfloat16), emb_ref[...],
                     preferred_element_type=jnp.float32)                 # (2TB, D)

    # [p1 | p2] via lane-concat of the two sublane halves
    pooled_cat = jnp.concatenate([pooled[:TB], pooled[TB:]], axis=1)     # (TB, 2D)

    # --- both MLP towers fused into single matmuls --------------------------
    h = jnp.maximum(
        jnp.dot(pooled_cat.astype(jnp.bfloat16), w1_ref[...],
                preferred_element_type=jnp.float32) + b1_ref[...], 0.0)  # (TB, 128)

    combined = (jnp.dot(h.astype(jnp.bfloat16), w2_ref[...],
                        preferred_element_type=jnp.float32)
                + b2_ref[...])                                           # (TB, 128)

    lin = (jnp.dot(combined.astype(jnp.bfloat16), wf_ref[...],
                   preferred_element_type=jnp.float32)
           + bf_ref[...])                                                # (TB, 128)

    out_ref[...] = jax.nn.sigmoid(lin).astype(out_ref.dtype)


# ---------------------------------------------------------------------------
# Params / one-time fusion / wrapper
# ---------------------------------------------------------------------------
def init_params(key, vocab_size, input_size, hidden_size, output_size):
    ks = jax.random.split(key, 6)

    def lin(k, fan_in, fan_out):
        bound = 1.0 / jnp.sqrt(fan_in)
        kw, kb = jax.random.split(k)
        w = jax.random.uniform(kw, (fan_in, fan_out), jnp.float32, -bound, bound)
        b = jax.random.uniform(kb, (1, fan_out), jnp.float32, -bound, bound)
        return w, b

    emb = jax.random.normal(ks[0], (vocab_size, input_size), jnp.float32)
    w1, b1 = lin(ks[1], input_size, hidden_size)
    w12, b12 = lin(ks[2], hidden_size, 32)
    w2, b2 = lin(ks[3], input_size, hidden_size)
    w21, b21 = lin(ks[4], hidden_size, 32)
    wf, bf = lin(ks[5], 64, output_size)
    return dict(embedding=emb, w1=w1, b1=b1, w12=w12, b12=b12,
                w2=w2, b2=b2, w21=w21, b21=b21, wf=wf, bf=bf)


def fuse_params(params, seq_len):
    """One-time host-side fusion: single bf16 emb with 1/S folded in, tower-fused
    zero-padded lane-dense MLP weights, bf16 MXU operands, f32 biases."""
    emb = params["embedding"]
    V, D = emb.shape
    H = params["w1"].shape[1]          # hidden per tower
    O = params["w12"].shape[1]         # per-tower layer-2 output (=32)
    OUT = params["wf"].shape[1]
    VP, HP, CP, OP = 128, 128, 128, 128
    assert V <= VP and 2 * H <= HP and 2 * O <= CP and OUT <= OP

    # embedding: padded vocab rows, mean (1/S) pre-folded, bf16 for the MXU
    emb_p = jnp.zeros((VP, D), jnp.float32).at[:V].set(emb / seq_len)

    # layer1: [p1 | p2] (2D) -> [h1 | h2 | 0...] (HP)
    w1_f = jnp.zeros((2 * D, HP), jnp.float32)
    w1_f = w1_f.at[:D, :H].set(params["w1"]).at[D:, H:2 * H].set(params["w2"])
    b1_f = jnp.zeros((1, HP), jnp.float32)
    b1_f = b1_f.at[:, :H].set(params["b1"]).at[:, H:2 * H].set(params["b2"])

    # layer2: [h1 | h2 | 0...] (HP) -> [o1 | o2 | 0...] (CP)
    w2_f = jnp.zeros((HP, CP), jnp.float32)
    w2_f = w2_f.at[:H, :O].set(params["w12"]).at[H:2 * H, O:2 * O].set(params["w21"])
    b2_f = jnp.zeros((1, CP), jnp.float32)
    b2_f = b2_f.at[:, :O].set(params["b12"]).at[:, O:2 * O].set(params["b21"])

    # final Linear, zero-padded to a lane-dense (128-wide) output
    wf_f = jnp.zeros((CP, OP), jnp.float32).at[:2 * O, :OUT].set(params["wf"])
    bf_f = jnp.zeros((1, OP), jnp.float32).at[:, :OUT].set(params["bf"])

    return dict(
        emb=emb_p.astype(jnp.bfloat16),
        w1=w1_f.astype(jnp.bfloat16), b1=b1_f,
        w2=w2_f.astype(jnp.bfloat16), b2=b2_f,
        wf=wf_f.astype(jnp.bfloat16), bf=bf_f,
        out_size=OUT, out_pad=OP,
    )


def dan_forward(sentence1, sentence2, fused, *, tb=None):
    B, S = sentence1.shape
    out_pad, out_size = fused["out_pad"], fused["out_size"]

    if tb is None:
        tb = B if B <= 128 else 128
    assert B % tb == 0 and (tb % 8 == 0 or tb == B)
    grid = (B // tb,)

    args = (sentence1.astype(jnp.int32), sentence2.astype(jnp.int32),
            fused["emb"], fused["w1"], fused["b1"],
            fused["w2"], fused["b2"], fused["wf"], fused["bf"])

    in_specs = [
        pl.BlockSpec((tb, S), lambda i: (i, 0)),                  # sentence1 ids
        pl.BlockSpec((tb, S), lambda i: (i, 0)),                  # sentence2 ids
        pl.BlockSpec(fused["emb"].shape, lambda i: (0, 0)),       # emb (VP, D)
        pl.BlockSpec(fused["w1"].shape, lambda i: (0, 0)),
        pl.BlockSpec(fused["b1"].shape, lambda i: (0, 0)),
        pl.BlockSpec(fused["w2"].shape, lambda i: (0, 0)),
        pl.BlockSpec(fused["b2"].shape, lambda i: (0, 0)),
        pl.BlockSpec(fused["wf"].shape, lambda i: (0, 0)),
        pl.BlockSpec(fused["bf"].shape, lambda i: (0, 0)),
    ]
    out_specs = pl.BlockSpec((tb, out_pad), lambda i: (i, 0))

    out_padded = pl.pallas_call(
        dan_kernel,
        out_shape=jax.ShapeDtypeStruct((B, out_pad), jnp.float32),
        grid=grid,
        in_specs=in_specs,
        out_specs=out_specs,
        compiler_params=pltpu.CompilerParams(
            dimension_semantics=("parallel",)),
    )(*args)
    return out_padded[:, :out_size]


# ---------------------------------------------------------------------------
# Pure-JAX reference (mirrors the PyTorch module) for correctness checking
# ---------------------------------------------------------------------------
def dan_reference(sentence1, sentence2, params):
    emb = params["embedding"]
    p1 = jnp.mean(jnp.take(emb, sentence1, axis=0), axis=1)
    h1 = jax.nn.relu(p1 @ params["w1"] + params["b1"])
    o1 = h1 @ params["w12"] + params["b12"]
    p2 = jnp.mean(jnp.take(emb, sentence2, axis=0), axis=1)
    h2 = jax.nn.relu(p2 @ params["w2"] + params["b2"])
    o2 = h2 @ params["w21"] + params["b21"]
    combined = jnp.concatenate([o1, o2], axis=1)
    return jax.nn.sigmoid(combined @ params["wf"] + params["bf"])


if __name__ == "__main__":
    B, S = 8, 8            # batch, sequence length
    V = 50                 # vocab size
    INPUT_SIZE = 32        # embedding dim / input_size
    HIDDEN = 32
    OUTPUT = 4

    key = jax.random.PRNGKey(0)
    k_params, k_s1, k_s2 = jax.random.split(key, 3)

    params = init_params(k_params, V, INPUT_SIZE, HIDDEN, OUTPUT)
    fused = fuse_params(params, seq_len=S)
    sentence1 = jax.random.randint(k_s1, (B, S), 0, V, dtype=jnp.int32)
    sentence2 = jax.random.randint(k_s2, (B, S), 0, V, dtype=jnp.int32)

    out = dan_forward(sentence1, sentence2, fused)
    out = jax.block_until_ready(out)

    # sanity: shape/dtype + sigmoid range + match against plain-JAX f32 reference
    # (tolerance loosened vs. pure-f32 since MXU operands are bf16)
    assert out.shape == (B, OUTPUT) and out.dtype == jnp.float32
    assert bool(jnp.all((out >= 0.0) & (out <= 1.0)))
    ref = dan_reference(sentence1, sentence2, params)
    np.testing.assert_allclose(np.asarray(out), np.asarray(ref), atol=1.5e-2, rtol=0)

    print("KERNEL_OK")
</pallas_src>

<mosaic_0001>
module attributes {stable_mosaic.version = 11 : i64} {
  func.func @dan_kernel(%arg0: i32, %arg1: memref<8x8xi32, #tpu.memory_space<vmem>>, %arg2: memref<8x8xi32, #tpu.memory_space<vmem>>, %arg3: memref<128x32xbf16, #tpu.memory_space<vmem>>, %arg4: memref<64x128xbf16, #tpu.memory_space<vmem>>, %arg5: memref<1x128xf32, #tpu.memory_space<vmem>>, %arg6: memref<128x128xbf16, #tpu.memory_space<vmem>>, %arg7: memref<1x128xf32, #tpu.memory_space<vmem>>, %arg8: memref<128x128xbf16, #tpu.memory_space<vmem>>, %arg9: memref<1x128xf32, #tpu.memory_space<vmem>>, %arg10: memref<8x128xf32, #tpu.memory_space<vmem>>) attributes {dimension_semantics = [#tpu.dimension_semantics<parallel>], iteration_bounds = array<i64: 1>, scalar_prefetch = 0 : i64, scratch_operands = 0 : i64, tpu.core_type = #tpu.core_type<tc>, window_params = [{transform_indices = @transform_0, window_bounds = array<i64: 8, 8>}, {transform_indices = @transform_1, window_bounds = array<i64: 8, 8>}, {pipeline_mode = #tpu.pipeline_mode<synchronous>, transform_indices = @transform_2, window_bounds = array<i64: 128, 32>}, {pipeline_mode = #tpu.pipeline_mode<synchronous>, transform_indices = @transform_3, window_bounds = array<i64: 64, 128>}, {pipeline_mode = #tpu.pipeline_mode<synchronous>, transform_indices = @transform_4, window_bounds = array<i64: 1, 128>}, {pipeline_mode = #tpu.pipeline_mode<synchronous>, transform_indices = @transform_5, window_bounds = array<i64: 128, 128>}, {pipeline_mode = #tpu.pipeline_mode<synchronous>, transform_indices = @transform_6, window_bounds = array<i64: 1, 128>}, {pipeline_mode = #tpu.pipeline_mode<synchronous>, transform_indices = @transform_7, window_bounds = array<i64: 128, 128>}, {pipeline_mode = #tpu.pipeline_mode<synchronous>, transform_indices = @transform_8, window_bounds = array<i64: 1, 128>}, {transform_indices = @transform_9, window_bounds = array<i64: 8, 128>}]} {
    %c0 = arith.constant 0 : index
    %c0_0 = arith.constant 0 : index
    %0 = vector.load %arg1[%c0, %c0_0] : memref<8x8xi32, #tpu.memory_space<vmem>>, vector<8x8xi32>
    %c0_1 = arith.constant 0 : index
    %c0_2 = arith.constant 0 : index
    %1 = vector.load %arg2[%c0_1, %c0_2] : memref<8x8xi32, #tpu.memory_space<vmem>>, vector<8x8xi32>
    %2 = tpu.concatenate %0, %1 in 0 : vector<8x8xi32>, vector<8x8xi32> -> vector<16x8xi32>
    %3 = tpu.iota {dimensions = array<i32: 1>} : vector<16x128xi32>
    %cst = arith.constant 0.000000e+00 : f32
    %4 = vector.broadcast %cst : f32 to vector<16x128xf32>
    %5 = vector.extract_strided_slice %2 {offsets = [0, 0], sizes = [16, 1], strides = [1, 1]} : vector<16x8xi32> to vector<16x1xi32>
    %6 = vector.broadcast %5 : vector<16x1xi32> to vector<16x128xi32>
    %7 = arith.cmpi eq, %6, %3 : vector<16x128xi32>
    %8 = arith.extui %7 : vector<16x128xi1> to vector<16x128xi32>
    %9 = arith.sitofp %8 : vector<16x128xi32> to vector<16x128xf32>
    %10 = arith.addf %4, %9 : vector<16x128xf32>
    %11 = vector.extract_strided_slice %2 {offsets = [0, 1], sizes = [16, 1], strides = [1, 1]} : vector<16x8xi32> to vector<16x1xi32>
    %12 = vector.broadcast %11 : vector<16x1xi32> to vector<16x128xi32>
    %13 = arith.cmpi eq, %12, %3 : vector<16x128xi32>
    %14 = arith.extui %13 : vector<16x128xi1> to vector<16x128xi32>
    %15 = arith.sitofp %14 : vector<16x128xi32> to vector<16x128xf32>
    %16 = arith.addf %10, %15 : vector<16x128xf32>
    %17 = vector.extract_strided_slice %2 {offsets = [0, 2], sizes = [16, 1], strides = [1, 1]} : vector<16x8xi32> to vector<16x1xi32>
    %18 = vector.broadcast %17 : vector<16x1xi32> to vector<16x128xi32>
    %19 = arith.cmpi eq, %18, %3 : vector<16x128xi32>
    %20 = arith.extui %19 : vector<16x128xi1> to vector<16x128xi32>
    %21 = arith.sitofp %20 : vector<16x128xi32> to vector<16x128xf32>
    %22 = arith.addf %16, %21 : vector<16x128xf32>
    %23 = vector.extract_strided_slice %2 {offsets = [0, 3], sizes = [16, 1], strides = [1, 1]} : vector<16x8xi32> to vector<16x1xi32>
    %24 = vector.broadcast %23 : vector<16x1xi32> to vector<16x128xi32>
    %25 = arith.cmpi eq, %24, %3 : vector<16x128xi32>
    %26 = arith.extui %25 : vector<16x128xi1> to vector<16x128xi32>
    %27 = arith.sitofp %26 : vector<16x128xi32> to vector<16x128xf32>
    %28 = arith.addf %22, %27 : vector<16x128xf32>
    %29 = vector.extract_strided_slice %2 {offsets = [0, 4], sizes = [16, 1], strides = [1, 1]} : vector<16x8xi32> to vector<16x1xi32>
    %30 = vector.broadcast %29 : vector<16x1xi32> to vector<16x128xi32>
    %31 = arith.cmpi eq, %30, %3 : vector<16x128xi32>
    %32 = arith.extui %31 : vector<16x128xi1> to vector<16x128xi32>
    %33 = arith.sitofp %32 : vector<16x128xi32> to vector<16x128xf32>
    %34 = arith.addf %28, %33 : vector<16x128xf32>
    %35 = vector.extract_strided_slice %2 {offsets = [0, 5], sizes = [16, 1], strides = [1, 1]} : vector<16x8xi32> to vector<16x1xi32>
    %36 = vector.broadcast %35 : vector<16x1xi32> to vector<16x128xi32>
    %37 = arith.cmpi eq, %36, %3 : vector<16x128xi32>
    %38 = arith.extui %37 : vector<16x128xi1> to vector<16x128xi32>
    %39 = arith.sitofp %38 : vector<16x128xi32> to vector<16x128xf32>
    %40 = arith.addf %34, %39 : vector<16x128xf32>
    %41 = vector.extract_strided_slice %2 {offsets = [0, 6], sizes = [16, 1], strides = [1, 1]} : vector<16x8xi32> to vector<16x1xi32>
    %42 = vector.broadcast %41 : vector<16x1xi32> to vector<16x128xi32>
    %43 = arith.cmpi eq, %42, %3 : vector<16x128xi32>
    %44 = arith.extui %43 : vector<16x128xi1> to vector<16x128xi32>
    %45 = arith.sitofp %44 : vector<16x128xi32> to vector<16x128xf32>
    %46 = arith.addf %40, %45 : vector<16x128xf32>
    %47 = vector.extract_strided_slice %2 {offsets = [0, 7], sizes = [16, 1], strides = [1, 1]} : vector<16x8xi32> to vector<16x1xi32>
    %48 = vector.broadcast %47 : vector<16x1xi32> to vector<16x128xi32>
    %49 = arith.cmpi eq, %48, %3 : vector<16x128xi32>
    %50 = arith.extui %49 : vector<16x128xi1> to vector<16x128xi32>
    %51 = arith.sitofp %50 : vector<16x128xi32> to vector<16x128xf32>
    %52 = arith.addf %46, %51 : vector<16x128xf32>
    %53 = arith.truncf %52 : vector<16x128xf32> to vector<16x128xbf16>
    %c0_3 = arith.constant 0 : index
    %c0_4 = arith.constant 0 : index
    %54 = vector.load %arg3[%c0_3, %c0_4] : memref<128x32xbf16, #tpu.memory_space<vmem>>, vector<128x32xbf16>
    %cst_5 = arith.constant dense<0.000000e+00> : vector<16x32xf32>
    %55 = tpu.matmul %53, %54, %cst_5 {dimension_numbers = #tpu.dot_dimension_numbers<[1], [0], [0], [1], [0, 0, 1, 1], [], []>} : vector<16x128xbf16>, vector<128x32xbf16>, vector<16x32xf32> -> vector<16x32xf32>
    %56 = vector.extract_strided_slice %55 {offsets = [0, 0], sizes = [8, 32], strides = [1, 1]} : vector<16x32xf32> to vector<8x32xf32>
    %57 = vector.extract_strided_slice %55 {offsets = [8, 0], sizes = [8, 32], strides = [1, 1]} : vector<16x32xf32> to vector<8x32xf32>
    %58 = tpu.concatenate %56, %57 in 1 : vector<8x32xf32>, vector<8x32xf32> -> vector<8x64xf32>
    %59 = arith.truncf %58 : vector<8x64xf32> to vector<8x64xbf16>
    %c0_6 = arith.constant 0 : index
    %c0_7 = arith.constant 0 : index
    %60 = vector.load %arg4[%c0_6, %c0_7] : memref<64x128xbf16, #tpu.memory_space<vmem>>, vector<64x128xbf16>
    %cst_8 = arith.constant dense<0.000000e+00> : vector<8x128xf32>
    %61 = tpu.matmul %59, %60, %cst_8 {dimension_numbers = #tpu.dot_dimension_numbers<[1], [0], [0], [1], [0, 0, 1, 1], [], []>} : vector<8x64xbf16>, vector<64x128xbf16>, vector<8x128xf32> -> vector<8x128xf32>
    %c0_9 = arith.constant 0 : index
    %c0_10 = arith.constant 0 : index
    %62 = vector.load %arg5[%c0_9, %c0_10] : memref<1x128xf32, #tpu.memory_space<vmem>>, vector<1x128xf32>
    %63 = vector.broadcast %62 : vector<1x128xf32> to vector<8x128xf32>
    %64 = arith.addf %61, %63 : vector<8x128xf32>
    %cst_11 = arith.constant 0.000000e+00 : f32
    %65 = vector.broadcast %cst_11 : f32 to vector<8x128xf32>
    %66 = arith.maximumf %64, %65 : vector<8x128xf32>
    %67 = arith.truncf %66 : vector<8x128xf32> to vector<8x128xbf16>
    %c0_12 = arith.constant 0 : index
    %c0_13 = arith.constant 0 : index
    %68 = vector.load %arg6[%c0_12, %c0_13] : memref<128x128xbf16, #tpu.memory_space<vmem>>, vector<128x128xbf16>
    %cst_14 = arith.constant dense<0.000000e+00> : vector<8x128xf32>
    %69 = tpu.matmul %67, %68, %cst_14 {dimension_numbers = #tpu.dot_dimension_numbers<[1], [0], [0], [1], [0, 0, 1, 1], [], []>} : vector<8x128xbf16>, vector<128x128xbf16>, vector<8x128xf32> -> vector<8x128xf32>
    %c0_15 = arith.constant 0 : index
    %c0_16 = arith.constant 0 : index
    %70 = vector.load %arg7[%c0_15, %c0_16] : memref<1x128xf32, #tpu.memory_space<vmem>>, vector<1x128xf32>
    %71 = vector.broadcast %70 : vector<1x128xf32> to vector<8x128xf32>
    %72 = arith.addf %69, %71 : vector<8x128xf32>
    %73 = arith.truncf %72 : vector<8x128xf32> to vector<8x128xbf16>
    %c0_17 = arith.constant 0 : index
    %c0_18 = arith.constant 0 : index
    %74 = vector.load %arg8[%c0_17, %c0_18] : memref<128x128xbf16, #tpu.memory_space<vmem>>, vector<128x128xbf16>
    %cst_19 = arith.constant dense<0.000000e+00> : vector<8x128xf32>
    %75 = tpu.matmul %73, %74, %cst_19 {dimension_numbers = #tpu.dot_dimension_numbers<[1], [0], [0], [1], [0, 0, 1, 1], [], []>} : vector<8x128xbf16>, vector<128x128xbf16>, vector<8x128xf32> -> vector<8x128xf32>
    %c0_20 = arith.constant 0 : index
    %c0_21 = arith.constant 0 : index
    %76 = vector.load %arg9[%c0_20, %c0_21] : memref<1x128xf32, #tpu.memory_space<vmem>>, vector<1x128xf32>
    %77 = vector.broadcast %76 : vector<1x128xf32> to vector<8x128xf32>
    %78 = arith.addf %75, %77 : vector<8x128xf32>
    %79 = arith.negf %78 : vector<8x128xf32>
    %80 = math.exp %79 : vector<8x128xf32>
    %cst_22 = arith.constant 1.000000e+00 : f32
    %81 = vector.broadcast %cst_22 : f32 to vector<8x128xf32>
    %82 = arith.addf %81, %80 : vector<8x128xf32>
    %83 = arith.divf %81, %82 : vector<8x128xf32>
    %c0_23 = arith.constant 0 : index
    %c0_24 = arith.constant 0 : index
    %84 = vector.load %arg10[%c0_23, %c0_24] : memref<8x128xf32, #tpu.memory_space<vmem>>, vector<8x128xf32>
    tpu.vector_store %arg10[%c0_23, %c0_24], %83 {strides = array<i32>} : memref<8x128xf32, #tpu.memory_space<vmem>>, vector<8x128xf32>,
    return
  }
  func.func @transform_0(%arg0: i32) -> (i32, i32) {
    %c0_i32 = arith.constant 0 : i32
    %c0_i32_0 = arith.constant 0 : i32
    return %arg0, %c0_i32 : i32, i32
  }
  func.func @transform_1(%arg0: i32) -> (i32, i32) {
    %c0_i32 = arith.constant 0 : i32
    %c0_i32_0 = arith.constant 0 : i32
    return %arg0, %c0_i32 : i32, i32
  }
  func.func @transform_2(%arg0: i32) -> (i32, i32) {
    %c0_i32 = arith.constant 0 : i32
    %c0_i32_0 = arith.constant 0 : i32
    %c0_i32_1 = arith.constant 0 : i32
    return %c0_i32, %c0_i32_0 : i32, i32
  }
  func.func @transform_3(%arg0: i32) -> (i32, i32) {
    %c0_i32 = arith.constant 0 : i32
    %c0_i32_0 = arith.constant 0 : i32
    %c0_i32_1 = arith.constant 0 : i32
    return %c0_i32, %c0_i32_0 : i32, i32
  }
  func.func @transform_4(%arg0: i32) -> (i32, i32) {
    %c0_i32 = arith.constant 0 : i32
    %c0_i32_0 = arith.constant 0 : i32
    %c0_i32_1 = arith.constant 0 : i32
    return %c0_i32, %c0_i32_0 : i32, i32
  }
  func.func @transform_5(%arg0: i32) -> (i32, i32) {
    %c0_i32 = arith.constant 0 : i32
    %c0_i32_0 = arith.constant 0 : i32
    %c0_i32_1 = arith.constant 0 : i32
    return %c0_i32, %c0_i32_0 : i32, i32
  }
  func.func @transform_6(%arg0: i32) -> (i32, i32) {
    %c0_i32 = arith.constant 0 : i32
    %c0_i32_0 = arith.constant 0 : i32
    %c0_i32_1 = arith.constant 0 : i32
    return %c0_i32, %c0_i32_0 : i32, i32
  }
  func.func @transform_7(%arg0: i32) -> (i32, i32) {
    %c0_i32 = arith.constant 0 : i32
    %c0_i32_0 = arith.constant 0 : i32
    %c0_i32_1 = arith.constant 0 : i32
    return %c0_i32, %c0_i32_0 : i32, i32
  }
  func.func @transform_8(%arg0: i32) -> (i32, i32) {
    %c0_i32 = arith.constant 0 : i32
    %c0_i32_0 = arith.constant 0 : i32
    %c0_i32_1 = arith.constant 0 : i32
    return %c0_i32, %c0_i32_0 : i32, i32
  }
  func.func @transform_9(%arg0: i32) -> (i32, i32) {
    %c0_i32 = arith.constant 0 : i32
    %c0_i32_0 = arith.constant 0 : i32
    return %arg0, %c0_i32 : i32, i32
  }
}

</mosaic_0001>

<llo_original>
// kernel: tpu_custom_call.1
$region0: #{tpu_custom_call.1}
  #allocation0 [shape = 'u32[]', space=smem, size = 0x4, offset = 0x4, fixed_abs, tag = 'smem constant byte address 0x4 - core index']
  #allocation1 [shape = 'u32[144,128]{1,0:T(1,128)}', space=vmem, size = 0x12000, scoped, tag = 'internal scratch']
  %s0 = inlined_call_operand.hbm [shape: s32[8,8], index: 0, kind: input, shape index: {}]
  %s1 = inlined_call_operand.hbm [shape: s32[8,8], index: 1, kind: input, shape index: {}]
  %s2 = inlined_call_operand.vmem [shape: bf16[128,32], index: 2, kind: input, shape index: {}]
  %s3 = inlined_call_operand.vmem [shape: bf16[64,128], index: 3, kind: input, shape index: {}]
  %s4 = inlined_call_operand.vmem [shape: f32[1,128], index: 4, kind: input, shape index: {}]
  %s5 = inlined_call_operand.vmem [shape: bf16[128,128], index: 5, kind: input, shape index: {}]
  %s6 = inlined_call_operand.vmem [shape: f32[1,128], index: 6, kind: input, shape index: {}]
  %s7 = inlined_call_operand.hbm [shape: bf16[128,128], index: 7, kind: input, shape index: {}]
  %s8 = inlined_call_operand.vmem [shape: f32[1,128], index: 8, kind: input, shape index: {}]
  %s9 = inlined_call_operand.hbm [shape: f32[8,128], index: 9, kind: output, shape index: {}]
  %s10 = sld [smem:[#allocation0]]
  $region58: #{tpu_custom_call.1} parent=0
    _
  %s12 = ssub.s32 1, %s10
  %s13 = scalar_select 0, %s12, %s10
  $region1: #{tpu_custom_call.1} parent=0
    #allocation2 [shape = 'u8[4096]{0}', space=vmem, size = 0x1000, scoped, tag = 'input window, operand 0, single buffered']
    #allocation3 [shape = 's32[1]{0}', space=sflag, size = 0x4, scoped, tag = 'scoped memory for tpu_custom_call.1']
    #allocation4 [shape = 's32[1]{0}', space=sflag, size = 0x4, scoped, tag = 'scoped memory for tpu_custom_call.1']
    #allocation5 [shape = 'u8[4096]{0}', space=vmem, size = 0x1000, scoped, tag = 'input window, operand 1, single buffered']
    #allocation6 [shape = 's32[1]{0}', space=sflag, size = 0x4, scoped, tag = 'scoped memory for tpu_custom_call.1']
    #allocation7 [shape = 'u8[32768]{0}', space=vmem, size = 0x8000, scoped, tag = 'input window, operand 7, single buffered']
    #allocation8 [shape = 'u8[4096]{0}', space=vmem, size = 0x1000, scoped, tag = 'output window, operand 0, single buffered']
    %14 = vsyncpa [#allocation3], 0
    %15 = vsyncpa [#allocation6], 0
    %16 = vsyncpa [#allocation4], 0
    // Predicated region
    $region2: #{tpu_custom_call.1} parent=1 // pred_check
      _
    $region3: #{tpu_custom_call.1} parent=1 // pred_check_branch
      %18 = sbr.rel (0) target = $region5
    $region4: #{tpu_custom_call.1} parent=1 // pred_region
      %s20 = ssub.s32 128, 128
      %21 = vsyncadd [#allocation3], %s20
      %s23 = sshll.u32 [#allocation2], 4
      %s24 = int_to_ptr.vmem [resolvable:$true] %s23
      %26 = dma.hbm_to_vmem [thread:$0]  %s0, 128, %s24, [#allocation3]
    $region5: #{tpu_custom_call.1} parent=1 // pred_fallthru
      _
    // Predicated region
    $region6: #{tpu_custom_call.1} parent=1 // pred_check
      _
    $region7: #{tpu_custom_call.1} parent=1 // pred_check_branch
      %28 = sbr.rel (0) target = $region9
    $region8: #{tpu_custom_call.1} parent=1 // pred_region
      %s30 = ssub.s32 128, 128
      %31 = vsyncadd [#allocation6], %s30
      %s33 = sshll.u32 [#allocation5], 4
      %s34 = int_to_ptr.vmem [resolvable:$true] %s33
      %36 = dma.hbm_to_vmem [thread:$0]  %s1, 128, %s34, [#allocation6]
    $region9: #{tpu_custom_call.1} parent=1 // pred_fallthru
      _
    // Predicated region
    $region10: #{tpu_custom_call.1} parent=1 // pred_check
      _
    $region11: #{tpu_custom_call.1} parent=1 // pred_check_branch
      %38 = sbr.rel (0) target = $region13
    $region12: #{tpu_custom_call.1} parent=1 // pred_region
      _
    $region13: #{tpu_custom_call.1} parent=1 // pred_fallthru
      _
    // Predicated region
    $region14: #{tpu_custom_call.1} parent=1 // pred_check
      _
    $region15: #{tpu_custom_call.1} parent=1 // pred_check_branch
      %40 = sbr.rel (0) target = $region17
    $region16: #{tpu_custom_call.1} parent=1 // pred_region
      _
    $region17: #{tpu_custom_call.1} parent=1 // pred_fallthru
      _
    // Predicated region
    $region18: #{tpu_custom_call.1} parent=1 // pred_check
      _
    $region19: #{tpu_custom_call.1} parent=1 // pred_check_branch
      %42 = sbr.rel (0) target = $region21
    $region20: #{tpu_custom_call.1} parent=1 // pred_region
      _
    $region21: #{tpu_custom_call.1} parent=1 // pred_fallthru
      _
    // Predicated region
    $region22: #{tpu_custom_call.1} parent=1 // pred_check
      _
    $region23: #{tpu_custom_call.1} parent=1 // pred_check_branch
      %44 = sbr.rel (0) target = $region25
    $region24: #{tpu_custom_call.1} parent=1 // pred_region
      _
    $region25: #{tpu_custom_call.1} parent=1 // pred_fallthru
      _
    // Predicated region
    $region26: #{tpu_custom_call.1} parent=1 // pred_check
      _
    $region27: #{tpu_custom_call.1} parent=1 // pred_check_branch
      %46 = sbr.rel (0) target = $region29
    $region28: #{tpu_custom_call.1} parent=1 // pred_region
      _
    $region29: #{tpu_custom_call.1} parent=1 // pred_fallthru
      _
    // Predicated region
    $region30: #{tpu_custom_call.1} parent=1 // pred_check
      _
    $region31: #{tpu_custom_call.1} parent=1 // pred_check_branch
      %48 = sbr.rel (0) target = $region33
    $region32: #{tpu_custom_call.1} parent=1 // pred_region
      %s50 = ssub.s32 1024, 1024
      %51 = vsyncadd [#allocation6], %s50
      %s52 = sshll.u32 [#allocation7], 4
      %s53 = int_to_ptr.vmem [resolvable:$true] %s52
      %58 = dma.hbm_to_vmem [thread:$0]  %s7, 1024, %s53, [#allocation6], 64, 64, 4
    $region33: #{tpu_custom_call.1} parent=1 // pred_fallthru
      _
    // Predicated region
    $region34: #{tpu_custom_call.1} parent=1 // pred_check
      _
    $region35: #{tpu_custom_call.1} parent=1 // pred_check_branch
      %60 = sbr.rel (0) target = $region37
    $region36: #{tpu_custom_call.1} parent=1 // pred_region
      _
    $region37: #{tpu_custom_call.1} parent=1 // pred_fallthru
      _
    // Predicated region
    $region38: #{tpu_custom_call.1} parent=1 // pred_check
      _
    $region39: #{tpu_custom_call.1} parent=1 // pred_check_branch
      %62 = sbr.rel (0) target = $region41
    $region40: #{tpu_custom_call.1} parent=1 // pred_region
      %63 = dma.done [#allocation3], 128
    $region41: #{tpu_custom_call.1} parent=1 // pred_fallthru
      _
    // Predicated region
    $region42: #{tpu_custom_call.1} parent=1 // pred_check
      _
    $region43: #{tpu_custom_call.1} parent=1 // pred_check_branch
      %65 = sbr.rel (0) target = $region45
    $region44: #{tpu_custom_call.1} parent=1 // pred_region
      %66 = dma.done [#allocation6], 128
    $region45: #{tpu_custom_call.1} parent=1 // pred_fallthru
      _
    // Predicated region
    $region46: #{tpu_custom_call.1} parent=1 // pred_check
      _
    $region47: #{tpu_custom_call.1} parent=1 // pred_check_branch
      %68 = sbr.rel (0) target = $region49
    $region48: #{tpu_custom_call.1} parent=1 // pred_region
      %69 = dma.done [#allocation6], 1024
    $region49: #{tpu_custom_call.1} parent=1 // pred_fallthru
      _
    %v71 = vld [vmem:[#allocation2] sm:$0xff]
    %v72 = vld [vmem:[#allocation5] sm:$0xff]
    %v73 = vlaneseq
    %v74 = vand.u32 %v73, 127
    %75 = vset.pattern.permute.xlu0 0
    %76 = vperm.xlu0 %75, %v71
    %v77 = vpop.permute.xlu0 %76
    %78 = vset.pattern.permute.xlu0 0
    %79 = vperm.xlu0 %78, %v72
    %v80 = vpop.permute.xlu0 %79
    %vm81 = vcmp.eq.s32.totalorder %v77, %v74
    %vm82 = vcmp.eq.s32.totalorder %v80, %v74
    %v83 = vsel %vm81, 1, 0
    %v84 = vsel %vm82, 1, 0
    %v85 = vcvt.s32.f32 %v83
    %v86 = vcvt.s32.f32 %v84
    %v87 = vadd.f32 %v85, 0.0
    %v88 = vadd.f32 %v86, 0.0
    %89 = vset.pattern.permute.xlu0 1
    %90 = vperm.xlu0 %89, %v71
    %v91 = vpop.permute.xlu0 %90
    %92 = vset.pattern.permute.xlu0 1
    %93 = vperm.xlu0 %92, %v72
    %v94 = vpop.permute.xlu0 %93
    %vm95 = vcmp.eq.s32.totalorder %v91, %v74
    %vm96 = vcmp.eq.s32.totalorder %v94, %v74
    %v97 = vsel %vm95, 1, 0
    %v98 = vsel %vm96, 1, 0
    %v99 = vcvt.s32.f32 %v97
    %v100 = vcvt.s32.f32 %v98
    %v101 = vadd.f32 %v87, %v99
    %v102 = vadd.f32 %v88, %v100
    %103 = vset.pattern.permute.xlu0 2
    %104 = vperm.xlu0 %103, %v71
    %v105 = vpop.permute.xlu0 %104
    %106 = vset.pattern.permute.xlu0 2
    %107 = vperm.xlu0 %106, %v72
    %v108 = vpop.permute.xlu0 %107
    %vm109 = vcmp.eq.s32.totalorder %v105, %v74
    %vm110 = vcmp.eq.s32.totalorder %v108, %v74
    %v111 = vsel %vm109, 1, 0
    %v112 = vsel %vm110, 1, 0
    %v113 = vcvt.s32.f32 %v111
    %v114 = vcvt.s32.f32 %v112
    %v115 = vadd.f32 %v101, %v113
    %v116 = vadd.f32 %v102, %v114
    %117 = vset.pattern.permute.xlu0 3
    %118 = vperm.xlu0 %117, %v71
    %v119 = vpop.permute.xlu0 %118
    %120 = vset.pattern.permute.xlu0 3
    %121 = vperm.xlu0 %120, %v72
    %v122 = vpop.permute.xlu0 %121
    %vm123 = vcmp.eq.s32.totalorder %v119, %v74
    %vm124 = vcmp.eq.s32.totalorder %v122, %v74
    %v125 = vsel %vm123, 1, 0
    %v126 = vsel %vm124, 1, 0
    %v127 = vcvt.s32.f32 %v125
    %v128 = vcvt.s32.f32 %v126
    %v129 = vadd.f32 %v115, %v127
    %v130 = vadd.f32 %v116, %v128
    %131 = vset.pattern.permute.xlu0 4
    %132 = vperm.xlu0 %131, %v71
    %v133 = vpop.permute.xlu0 %132
    %134 = vset.pattern.permute.xlu0 4
    %135 = vperm.xlu0 %134, %v72
    %v136 = vpop.permute.xlu0 %135
    %vm137 = vcmp.eq.s32.totalorder %v133, %v74
    %vm138 = vcmp.eq.s32.totalorder %v136, %v74
    %v139 = vsel %vm137, 1, 0
    %v140 = vsel %vm138, 1, 0
    %v141 = vcvt.s32.f32 %v139
    %v142 = vcvt.s32.f32 %v140
    %v143 = vadd.f32 %v129, %v141
    %v144 = vadd.f32 %v130, %v142
    %145 = vset.pattern.permute.xlu0 5
    %146 = vperm.xlu0 %145, %v71
    %v147 = vpop.permute.xlu0 %146
    %148 = vset.pattern.permute.xlu0 5
    %149 = vperm.xlu0 %148, %v72
    %v150 = vpop.permute.xlu0 %149
    %vm151 = vcmp.eq.s32.totalorder %v147, %v74
    %vm152 = vcmp.eq.s32.totalorder %v150, %v74
    %v153 = vsel %vm151, 1, 0
    %v154 = vsel %vm152, 1, 0
    %v155 = vcvt.s32.f32 %v153
    %v156 = vcvt.s32.f32 %v154
    %v157 = vadd.f32 %v143, %v155
    %v158 = vadd.f32 %v144, %v156
    %159 = vset.pattern.permute.xlu0 6
    %160 = vperm.xlu0 %159, %v71
    %v161 = vpop.permute.xlu0 %160
    %162 = vset.pattern.permute.xlu0 6
    %163 = vperm.xlu0 %162, %v72
    %v164 = vpop.permute.xlu0 %163
    %vm165 = vcmp.eq.s32.totalorder %v161, %v74
    %vm166 = vcmp.eq.s32.totalorder %v164, %v74
    %v167 = vsel %vm165, 1, 0
    %v168 = vsel %vm166, 1, 0
    %v169 = vcvt.s32.f32 %v167
    %v170 = vcvt.s32.f32 %v168
    %v171 = vadd.f32 %v157, %v169
    %v172 = vadd.f32 %v158, %v170
    %173 = vset.pattern.permute.xlu0 7
    %174 = vperm.xlu0 %173, %v71
    %v175 = vpop.permute.xlu0 %174
    %176 = vset.pattern.permute.xlu0 7
    %177 = vperm.xlu0 %176, %v72
    %v178 = vpop.permute.xlu0 %177
    %vm179 = vcmp.eq.s32.totalorder %v175, %v74
    %vm180 = vcmp.eq.s32.totalorder %v178, %v74
    %v181 = vsel %vm179, 1, 0
    %v182 = vsel %vm180, 1, 0
    %v183 = vcvt.s32.f32 %v181
    %v184 = vcvt.s32.f32 %v182
    %v185 = vadd.f32 %v171, %v183
    %v186 = vadd.f32 %v172, %v184
    %v187 = vpack.c.bf16 %v186, %v185
    %v188 = vld [vmem:[%s2] sm:$0xf]
    %v189 = vld [vmem:[%s2 + $0x4] sm:$0xf]
    %v190 = vld [vmem:[%s2 + $0x8] sm:$0xf]
    %v191 = vld [vmem:[%s2 + $0xc] sm:$0xf]
    %v192 = vld [vmem:[%s2 + $0x10] sm:$0xf]
    %v193 = vld [vmem:[%s2 + $0x14] sm:$0xf]
    %v194 = vld [vmem:[%s2 + $0x18] sm:$0xf]
    %v195 = vld [vmem:[%s2 + $0x1c] sm:$0xf]
    %v196 = vld [vmem:[%s2 + $0x20] sm:$0xf]
    %v197 = vld [vmem:[%s2 + $0x24] sm:$0xf]
    %v198 = vld [vmem:[%s2 + $0x28] sm:$0xf]
    %v199 = vld [vmem:[%s2 + $0x2c] sm:$0xf]
    %v200 = vld [vmem:[%s2 + $0x30] sm:$0xf]
    %v201 = vld [vmem:[%s2 + $0x34] sm:$0xf]
    %v202 = vld [vmem:[%s2 + $0x38] sm:$0xf]
    %v203 = vld [vmem:[%s2 + $0x3c] sm:$0xf]
    %v220 = vunpack.c.l.b16 %v188
    %v221 = vunpack.c.l.b16 %v189
    %v222 = vunpack.c.l.b16 %v190
    %v223 = vunpack.c.l.b16 %v191
    %v224 = vunpack.c.l.b16 %v192
    %v225 = vunpack.c.l.b16 %v193
    %v226 = vunpack.c.l.b16 %v194
    %v227 = vunpack.c.l.b16 %v195
    %v228 = vunpack.c.l.b16 %v196
    %v229 = vunpack.c.l.b16 %v197
    %v230 = vunpack.c.l.b16 %v198
    %v231 = vunpack.c.l.b16 %v199
    %v232 = vunpack.c.l.b16 %v200
    %v233 = vunpack.c.l.b16 %v201
    %v234 = vunpack.c.l.b16 %v202
    %v235 = vunpack.c.l.b16 %v203
    %v236 = vpack.c.b16 %v221, %v220
    %v237 = vpack.c.b16 %v223, %v222
    %v238 = vpack.c.b16 %v225, %v224
    %v239 = vpack.c.b16 %v227, %v226
    %v240 = vpack.c.b16 %v229, %v228
    %v241 = vpack.c.b16 %v231, %v230
    %v242 = vpack.c.b16 %v233, %v232
    %v243 = vpack.c.b16 %v235, %v234
    %252 = vmatprep.subr.bf16.mxu0 0
    %253 = vmatpush1.bf16.msra.mxu0 %v236
    %254 = vmatprep.subr.bf16.mxu0 0
    %255 = vmatpush1.bf16.msra.mxu0 %v237
    %256 = vmatprep.subr.bf16.mxu0 0
    %257 = vmatpush1.bf16.msra.mxu0 %v238
    %258 = vmatprep.subr.bf16.mxu0 0
    %259 = vmatpush1.bf16.msra.mxu0 %v239
    %260 = vmatprep.subr.bf16.mxu0 0
    %261 = vmatpush1.bf16.msra.mxu0 %v240
    %262 = vmatprep.subr.bf16.mxu0 0
    %263 = vmatpush1.bf16.msra.mxu0 %v241
    %264 = vmatprep.subr.bf16.mxu0 0
    %265 = vmatpush1.bf16.msra.mxu0 %v242
    %266 = vmatprep.subr.bf16.mxu0 0
    %267 = vmatpush1.bf16.msra.mxu0 %v243
    %268 = vmatprep.subr.bf16.mxu0 0
    %269 = vmatpush1.bf16.msra.mxu0 0
    %270 = vmatprep.subr.bf16.mxu0 0
    %271 = vmatpush1.bf16.msra.mxu0 0
    %272 = vmatprep.subr.bf16.mxu0 0
    %273 = vmatpush1.bf16.msra.mxu0 0
    %274 = vmatprep.subr.bf16.mxu0 0
    %275 = vmatpush1.bf16.msra.mxu0 0
    %276 = vmatprep.subr.bf16.mxu0 0
    %277 = vmatpush1.bf16.msra.mxu0 0
    %278 = vmatprep.subr.bf16.mxu0 0
    %279 = vmatpush1.bf16.msra.mxu0 0
    %280 = vmatprep.subr.bf16.mxu0 0
    %281 = vmatpush1.bf16.msra.mxu0 0
    %282 = vmatprep.subr.bf16.mxu0 0
    %283 = vmatpush1.bf16.msra.mxu0 0
    %284 = vmatprep.mubr.bf16.mxu0 0
    %285 = vmatmul.mubr.bf16.gmra.mrb[0].mxu0 %v187
    %v286 = vpop.f32.mrb[0].mxu0
    %v287 = vadd.f32 0.0, %v286
    %v288 = vpop.f32.mrb[0].mxu0
    %v289 = vpop.f32.mrb[0].mxu0
    %v290 = vadd.f32 0.0, %v289
    %v291 = vpop.f32.mrb[0].mxu0
    %292 = vdwg.mxu0
    %294 = vrot.lane.b32.xlu0 %v290, 32
    %v295 = vpop.permute.xlu0 %294
    %vm297 = vcmask 261120
    %v298 = vsel %vm297, %v287, %v295
    %v299 = vpack.c.bf16 %v298, %v298
    %v300 = vld [vmem:[%s3] sm:$0xf]
    %v301 = vld [vmem:[%s3 + $0x4] sm:$0xf]
    %v302 = vld [vmem:[%s3 + $0x8] sm:$0xf]
    %v303 = vld [vmem:[%s3 + $0xc] sm:$0xf]
    %v304 = vld [vmem:[%s3 + $0x10] sm:$0xf]
    %v305 = vld [vmem:[%s3 + $0x14] sm:$0xf]
    %v306 = vld [vmem:[%s3 + $0x18] sm:$0xf]
    %v307 = vld [vmem:[%s3 + $0x1c] sm:$0xf]
    %v308 = vld [vmem:[%s4] sm:$0x1]
    %v310 = vlaneseq
    %v311 = vshrl.u32 %v310, 7
    %v312 = vsub.s32 0, %v311
    %v313 = vrot.slane %v308, %v312
    %v323 = vunpack.c.l.b16 %v300
    %v324 = vunpack.c.l.b16 %v301
    %v325 = vunpack.c.l.b16 %v302
    %v326 = vunpack.c.l.b16 %v303
    %v327 = vunpack.c.l.b16 %v304
    %v328 = vunpack.c.l.b16 %v305
    %v329 = vunpack.c.l.b16 %v306
    %v330 = vunpack.c.l.b16 %v307
    %v331 = vpack.c.b16 %v324, %v323
    %v332 = vpack.c.b16 %v326, %v325
    %v333 = vpack.c.b16 %v328, %v327
    %v334 = vpack.c.b16 %v330, %v329
    %vm339 = vcmask 523264
    %v341 = vsel %vm339, %v299, 0
    %343 = vmatprep.subr.bf16.mxu0 0
    %344 = vmatpush1.bf16.msra.mxu0 %v331
    %345 = vmatprep.subr.bf16.mxu0 0
    %346 = vmatpush1.bf16.msra.mxu0 %v332
    %347 = vmatprep.subr.bf16.mxu0 0
    %348 = vmatpush1.bf16.msra.mxu0 %v333
    %349 = vmatprep.subr.bf16.mxu0 0
    %350 = vmatpush1.bf16.msra.mxu0 %v334
    %351 = vmatprep.subr.bf16.mxu0 0
    %352 = vmatpush1.bf16.msra.mxu0 0
    %353 = vmatprep.subr.bf16.mxu0 0
    %354 = vmatpush1.bf16.msra.mxu0 0
    %355 = vmatprep.subr.bf16.mxu0 0
    %356 = vmatpush1.bf16.msra.mxu0 0
    %357 = vmatprep.subr.bf16.mxu0 0
    %358 = vmatpush1.bf16.msra.mxu0 0
    %359 = vmatprep.subr.bf16.mxu0 0
    %360 = vmatpush1.bf16.msra.mxu0 0
    %361 = vmatprep.subr.bf16.mxu0 0
    %362 = vmatpush1.bf16.msra.mxu0 0
    %363 = vmatprep.subr.bf16.mxu0 0
    %364 = vmatpush1.bf16.msra.mxu0 0
    %365 = vmatprep.subr.bf16.mxu0 0
    %366 = vmatpush1.bf16.msra.mxu0 0
    %367 = vmatprep.subr.bf16.mxu0 0
    %368 = vmatpush1.bf16.msra.mxu0 0
    %369 = vmatprep.subr.bf16.mxu0 0
    %370 = vmatpush1.bf16.msra.mxu0 0
    %371 = vmatprep.subr.bf16.mxu0 0
    %372 = vmatpush1.bf16.msra.mxu0 0
    %373 = vmatprep.subr.bf16.mxu0 0
    %374 = vmatpush1.bf16.msra.mxu0 0
    %375 = vmatprep.mubr.bf16.mxu0 0
    %376 = vmatmul.mubr.bf16.gmra.mrb[0].mxu0 %v341
    %v377 = vpop.f32.mrb[0].mxu0
    %v378 = vadd.f32 %v313, %v377
    %v379 = vpop.f32.mrb[0].mxu0
    %v380 = vpop.f32.mrb[0].mxu0
    %v381 = vpop.f32.mrb[0].mxu0
    %382 = vdwg.mxu0
    %v383 = vmax.f32 %v378, 0.0
    %v384 = vpack.c.bf16 %v383, %v383
    %v385 = vld [vmem:[%s5] sm:$0xf]
    %v386 = vld [vmem:[%s5 + $0x4] sm:$0xf]
    %v387 = vld [vmem:[%s5 + $0x8] sm:$0xf]
    %v388 = vld [vmem:[%s5 + $0xc] sm:$0xf]
    %v389 = vld [vmem:[%s5 + $0x10] sm:$0xf]
    %v390 = vld [vmem:[%s5 + $0x14] sm:$0xf]
    %v391 = vld [vmem:[%s5 + $0x18] sm:$0xf]
    %v392 = vld [vmem:[%s5 + $0x1c] sm:$0xf]
    %v393 = vld [vmem:[%s5 + $0x20] sm:$0xf]
    %v394 = vld [vmem:[%s5 + $0x24] sm:$0xf]
    %v395 = vld [vmem:[%s5 + $0x28] sm:$0xf]
    %v396 = vld [vmem:[%s5 + $0x2c] sm:$0xf]
    %v397 = vld [vmem:[%s5 + $0x30] sm:$0xf]
    %v398 = vld [vmem:[%s5 + $0x34] sm:$0xf]
    %v399 = vld [vmem:[%s5 + $0x38] sm:$0xf]
    %v400 = vld [vmem:[%s5 + $0x3c] sm:$0xf]
    %v401 = vld [vmem:[%s6] sm:$0x1]
    %v403 = vlaneseq
    %v404 = vshrl.u32 %v403, 7
    %v405 = vsub.s32 0, %v404
    %v406 = vrot.slane %v401, %v405
    %v424 = vunpack.c.l.b16 %v385
    %v425 = vunpack.c.l.b16 %v386
    %v426 = vunpack.c.l.b16 %v387
    %v427 = vunpack.c.l.b16 %v388
    %v428 = vunpack.c.l.b16 %v389
    %v429 = vunpack.c.l.b16 %v390
    %v430 = vunpack.c.l.b16 %v391
    %v431 = vunpack.c.l.b16 %v392
    %v432 = vunpack.c.l.b16 %v393
    %v433 = vunpack.c.l.b16 %v394
    %v434 = vunpack.c.l.b16 %v395
    %v435 = vunpack.c.l.b16 %v396
    %v436 = vunpack.c.l.b16 %v397
    %v437 = vunpack.c.l.b16 %v398
    %v438 = vunpack.c.l.b16 %v399
    %v439 = vunpack.c.l.b16 %v400
    %v440 = vpack.c.b16 %v425, %v424
    %v441 = vpack.c.b16 %v427, %v426
    %v442 = vpack.c.b16 %v429, %v428
    %v443 = vpack.c.b16 %v431, %v430
    %v444 = vpack.c.b16 %v433, %v432
    %v445 = vpack.c.b16 %v435, %v434
    %v446 = vpack.c.b16 %v437, %v436
    %v447 = vpack.c.b16 %v439, %v438
    %456 = vmatprep.subr.bf16.mxu0 0
    %457 = vmatpush1.bf16.msra.mxu0 %v440
    %458 = vmatprep.subr.bf16.mxu0 0
    %459 = vmatpush1.bf16.msra.mxu0 %v441
    %460 = vmatprep.subr.bf16.mxu0 0
    %461 = vmatpush1.bf16.msra.mxu0 %v442
    %462 = vmatprep.subr.bf16.mxu0 0
    %463 = vmatpush1.bf16.msra.mxu0 %v443
    %464 = vmatprep.subr.bf16.mxu0 0
    %465 = vmatpush1.bf16.msra.mxu0 %v444
    %466 = vmatprep.subr.bf16.mxu0 0
    %467 = vmatpush1.bf16.msra.mxu0 %v445
    %468 = vmatprep.subr.bf16.mxu0 0
    %469 = vmatpush1.bf16.msra.mxu0 %v446
    %470 = vmatprep.subr.bf16.mxu0 0
    %471 = vmatpush1.bf16.msra.mxu0 %v447
    %472 = vmatprep.subr.bf16.mxu0 0
    %473 = vmatpush1.bf16.msra.mxu0 0
    %474 = vmatprep.subr.bf16.mxu0 0
    %475 = vmatpush1.bf16.msra.mxu0 0
    %476 = vmatprep.subr.bf16.mxu0 0
    %477 = vmatpush1.bf16.msra.mxu0 0
    %478 = vmatprep.subr.bf16.mxu0 0
    %479 = vmatpush1.bf16.msra.mxu0 0
    %480 = vmatprep.subr.bf16.mxu0 0
    %481 = vmatpush1.bf16.msra.mxu0 0
    %482 = vmatprep.subr.bf16.mxu0 0
    %483 = vmatpush1.bf16.msra.mxu0 0
    %484 = vmatprep.subr.bf16.mxu0 0
    %485 = vmatpush1.bf16.msra.mxu0 0
    %486 = vmatprep.subr.bf16.mxu0 0
    %487 = vmatpush1.bf16.msra.mxu0 0
    %488 = vmatprep.mubr.bf16.mxu0 0
    %489 = vmatmul.mubr.bf16.gmra.mrb[0].mxu0 %v384
    %v490 = vpop.f32.mrb[0].mxu0
    %v491 = vadd.f32 %v406, %v490
    %v492 = vpop.f32.mrb[0].mxu0
    %v493 = vpop.f32.mrb[0].mxu0
    %v494 = vpop.f32.mrb[0].mxu0
    %495 = vdwg.mxu0
    %v496 = vpack.c.bf16 %v491, %v491
    %v497 = vld [vmem:[#allocation7] sm:$0xf]
    %v498 = vld [vmem:[#allocation7 + $0x4] sm:$0xf]
    %v499 = vld [vmem:[#allocation7 + $0x8] sm:$0xf]
    %v500 = vld [vmem:[#allocation7 + $0xc] sm:$0xf]
    %v501 = vld [vmem:[#allocation7 + $0x10] sm:$0xf]
    %v502 = vld [vmem:[#allocation7 + $0x14] sm:$0xf]
    %v503 = vld [vmem:[#allocation7 + $0x18] sm:$0xf]
    %v504 = vld [vmem:[#allocation7 + $0x1c] sm:$0xf]
    %v505 = vld [vmem:[#allocation7 + $0x20] sm:$0xf]
    %v506 = vld [vmem:[#allocation7 + $0x24] sm:$0xf]
    %v507 = vld [vmem:[#allocation7 + $0x28] sm:$0xf]
    %v508 = vld [vmem:[#allocation7 + $0x2c] sm:$0xf]
    %v509 = vld [vmem:[#allocation7 + $0x30] sm:$0xf]
    %v510 = vld [vmem:[#allocation7 + $0x34] sm:$0xf]
    %v511 = vld [vmem:[#allocation7 + $0x38] sm:$0xf]
    %v512 = vld [vmem:[#allocation7 + $0x3c] sm:$0xf]
    %v513 = vld [vmem:[%s8] sm:$0x1]
    %v515 = vlaneseq
    %v516 = vshrl.u32 %v515, 7
    %v517 = vsub.s32 0, %v516
    %v518 = vrot.slane %v513, %v517
    %v536 = vunpack.c.l.b16 %v497
    %v537 = vunpack.c.l.b16 %v498
    %v538 = vunpack.c.l.b16 %v499
    %v539 = vunpack.c.l.b16 %v500
    %v540 = vunpack.c.l.b16 %v501
    %v541 = vunpack.c.l.b16 %v502
    %v542 = vunpack.c.l.b16 %v503
    %v543 = vunpack.c.l.b16 %v504
    %v544 = vunpack.c.l.b16 %v505
    %v545 = vunpack.c.l.b16 %v506
    %v546 = vunpack.c.l.b16 %v507
    %v547 = vunpack.c.l.b16 %v508
    %v548 = vunpack.c.l.b16 %v509
    %v549 = vunpack.c.l.b16 %v510
    %v550 = vunpack.c.l.b16 %v511
    %v551 = vunpack.c.l.b16 %v512
    %v552 = vpack.c.b16 %v537, %v536
    %v553 = vpack.c.b16 %v539, %v538
    %v554 = vpack.c.b16 %v541, %v540
    %v555 = vpack.c.b16 %v543, %v542
    %v556 = vpack.c.b16 %v545, %v544
    %v557 = vpack.c.b16 %v547, %v546
    %v558 = vpack.c.b16 %v549, %v548
    %v559 = vpack.c.b16 %v551, %v550
    %568 = vmatprep.subr.bf16.mxu0 0
    %569 = vmatpush1.bf16.msra.mxu0 %v552
    %570 = vmatprep.subr.bf16.mxu0 0
    %571 = vmatpush1.bf16.msra.mxu0 %v553
    %572 = vmatprep.subr.bf16.mxu0 0
    %573 = vmatpush1.bf16.msra.mxu0 %v554
    %574 = vmatprep.subr.bf16.mxu0 0
    %575 = vmatpush1.bf16.msra.mxu0 %v555
    %576 = vmatprep.subr.bf16.mxu0 0
    %577 = vmatpush1.bf16.msra.mxu0 %v556
    %578 = vmatprep.subr.bf16.mxu0 0
    %579 = vmatpush1.bf16.msra.mxu0 %v557
    %580 = vmatprep.subr.bf16.mxu0 0
    %581 = vmatpush1.bf16.msra.mxu0 %v558
    %582 = vmatprep.subr.bf16.mxu0 0
    %583 = vmatpush1.bf16.msra.mxu0 %v559
    %584 = vmatprep.subr.bf16.mxu0 0
    %585 = vmatpush1.bf16.msra.mxu0 0
    %586 = vmatprep.subr.bf16.mxu0 0
    %587 = vmatpush1.bf16.msra.mxu0 0
    %588 = vmatprep.subr.bf16.mxu0 0
    %589 = vmatpush1.bf16.msra.mxu0 0
    %590 = vmatprep.subr.bf16.mxu0 0
    %591 = vmatpush1.bf16.msra.mxu0 0
    %592 = vmatprep.subr.bf16.mxu0 0
    %593 = vmatpush1.bf16.msra.mxu0 0
    %594 = vmatprep.subr.bf16.mxu0 0
    %595 = vmatpush1.bf16.msra.mxu0 0
    %596 = vmatprep.subr.bf16.mxu0 0
    %597 = vmatpush1.bf16.msra.mxu0 0
    %598 = vmatprep.subr.bf16.mxu0 0
    %599 = vmatpush1.bf16.msra.mxu0 0
    %600 = vmatprep.mubr.bf16.mxu0 0
    %601 = vmatmul.mubr.bf16.gmra.mrb[0].mxu0 %v496
    %v602 = vpop.f32.mrb[0].mxu0
    %v603 = vadd.f32 %v518, %v602
    %v604 = vpop.f32.mrb[0].mxu0
    %v605 = vpop.f32.mrb[0].mxu0
    %v606 = vpop.f32.mrb[0].mxu0
    %607 = vdwg.mxu0
    %v608 = vxor.u32 %v603, 2147483648
    %v609 = vmul.f32 %v608, 1.442695
    %v610 = vpow.pop %v609
    %v611 = vadd.f32 %v610, 1.0
    %v612 = vrcp.pop %v611
    %v613 = vmul.f32 1.0, %v612
    %614 = vst [vmem:[#allocation8] sm:$0xff] %v613
    // Predicated region
    $region50: #{tpu_custom_call.1} parent=1 // pred_check
      _
    $region51: #{tpu_custom_call.1} parent=1 // pred_check_branch
      %616 = sbr.rel (0) target = $region53
    $region52: #{tpu_custom_call.1} parent=1 // pred_region
      %s618 = ssub.s32 128, 128
      %619 = vsyncadd [#allocation4], %s618
      %s621 = sshll.u32 [#allocation8], 4
      %s622 = int_to_ptr.vmem [resolvable:$true] %s621
      %624 = dma.vmem_to_hbm [thread:$0]  %s622, 128, %s9, [#allocation4]
    $region53: #{tpu_custom_call.1} parent=1 // pred_fallthru
      _
    // Predicated region
    $region54: #{tpu_custom_call.1} parent=1 // pred_check
      _
    $region55: #{tpu_custom_call.1} parent=1 // pred_check_branch
      %626 = sbr.rel (0) target = $region57
    $region56: #{tpu_custom_call.1} parent=1 // pred_region
      %627 = dma.done [#allocation4], 128
    $region57: #{tpu_custom_call.1} parent=1 // pred_fallthru
      _
    %628 = vsyncpa [#allocation3], 1
    %629 = vsyncpa [#allocation6], 1
    %630 = vsyncpa [#allocation4], 1

</llo_original>
